<compile_context>
chip_gen: v7x
topology: tpu7x:2x2x1
jax: 0.10.0
libtpu: 0.0.40
codegen_flags: <defaults>
</compile_context>

<pallas_src>
import math

import jax
import jax.numpy as jnp
from jax.experimental import pallas as pl
from jax.experimental.pallas import tpu as pltpu


def _dense_decay_kernel(d_ref, wt_ref, b_ref, o_ref):
    # (rb, k*In) @ (k*In, k*Out) on the MXU with f32 accumulation.
    # wt_ref holds the NEGATED block-diagonal W^T, b_ref the NEGATED tiled bias,
    # so gamma = exp(-relu(dW^T + b)) == exp(min(z, 0)).
    z = jnp.dot(d_ref[...], wt_ref[...], preferred_element_type=jnp.float32)
    z = z + b_ref[...]                      # broadcast (1, k*Out), f32 epilogue
    o_ref[...] = jnp.exp(jnp.minimum(z, 0.0)).astype(o_ref.dtype)


def _diag_decay_kernel(d_ref, wdiag_ref, b_ref, o_ref):
    # Diagonal linear == elementwise scale: pure VPU/EUP, no MXU involved.
    # wdiag_ref / b_ref are negated + lane-tiled, so gamma = exp(min(z, 0)).
    z = d_ref[...].astype(jnp.float32) * wdiag_ref[...] + b_ref[...]
    o_ref[...] = jnp.exp(jnp.minimum(z, 0.0)).astype(o_ref.dtype)


class TemporalDecayPallas:
    """gamma = exp(-relu(F.linear(d, W (* I if diag), b))) as a Pallas kernel.

    Parameters are prepared once at construction: the weight is negated and
    either block-diagonally packed (dense) or its diagonal extracted and
    lane-tiled (diag); the bias is negated and lane-tiled.  The callable
    accepts d with arbitrary leading dims -- (B, In) for a single RITS step or
    (T, B, In) for a whole sequence -- flattens them to rows, folds k rows into
    one 128-lane row, and streams fixed-size row tiles through a 1-D grid while
    the packed weight / bias stay resident in VMEM.
    """

    def __init__(self, W, b, diag=False, row_block=512):
        self.diag = bool(diag)
        self.out_size, self.in_size = int(W.shape[0]), int(W.shape[1])
        # Fixed row tile (folded rows).  Multiple of 16 sublanes so both f32
        # and bf16 d/out tiles satisfy the (8/16, 128) layout constraint.
        rb = max(16, int(row_block))
        self.row_block = ((rb + 15) // 16) * 16

        if self.diag:
            assert self.in_size == self.out_size, "diag=True requires square W"
            In = self.in_size
            k = 128 // In if (In < 128 and 128 % In == 0) else 1
            self.fold = k
            wdiag = jnp.diagonal(W).astype(jnp.float32)
            # Negated + lane-tiled (1, k*In): each folded row segment j sees wdiag.
            self.w_arr = jnp.tile(-wdiag, (k,)).reshape(1, k * In)
        else:
            Out = self.out_size
            k = 128 // Out if (Out < 128 and 128 % Out == 0) else 1
            self.fold = k
            wt = -W.T.astype(jnp.float32)                 # (In, Out), negated
            # Block-diagonal pack: (k*In, k*Out) with k copies of -W^T.
            self.w_arr = jnp.kron(jnp.eye(k, dtype=jnp.float32), wt)
        # Negated + lane-tiled bias (1, k*Out).
        self.b2 = jnp.tile(-b.astype(jnp.float32), (self.fold,)).reshape(
            1, self.fold * self.out_size)

    def __call__(self, d):
        In, Out, k, rb = self.in_size, self.out_size, self.fold, self.row_block
        assert d.shape[-1] == In
        lead = d.shape[:-1]
        R = int(math.prod(lead)) if lead else 1
        d2 = d.reshape(R, In)

        # Pad rows so the fold factor k and the fixed tile rb divide evenly,
        # then fold k rows into one (k*In)-lane row.  Fixed rb => same block
        # shapes for every leading shape => one compiled kernel.
        rows_per_tile = k * rb
        R_pad = pl.cdiv(R, rows_per_tile) * rows_per_tile
        if R_pad != R:
            d2 = jnp.pad(d2, ((0, R_pad - R), (0, 0)))
        Rf = R_pad // k                                    # folded rows
        d2 = d2.reshape(Rf, k * In)
        grid = (Rf // rb,)

        kIn, kOut = k * In, k * Out
        if self.diag:
            kernel = _diag_decay_kernel
            w_block = (1, kIn)
            flops = 3 * Rf * kIn                           # mul + add + min
        else:
            kernel = _dense_decay_kernel
            w_block = (kIn, kOut)
            flops = 2 * Rf * kIn * kOut + 2 * Rf * kOut    # matmul + bias/min

        elt = jnp.dtype(d.dtype).itemsize
        io_bytes = Rf * kIn * elt + Rf * kOut * elt
        resident_bytes = 4 * (self.w_arr.size + self.b2.size)
        cost = pl.CostEstimate(
            flops=int(flops),
            transcendentals=int(Rf * kOut),                # one exp per output elem
            bytes_accessed=int(io_bytes + resident_bytes),
        )

        # VMEM budget: double-buffered d/out tiles + resident weight/bias.
        tile_bytes = rb * kIn * elt + rb * kOut * elt
        need = 2 * tile_bytes + 2 * resident_bytes
        vmem_limit = int(min(max(2 * need, 16 << 20), 48 << 20))

        out = pl.pallas_call(
            kernel,
            out_shape=jax.ShapeDtypeStruct((Rf, kOut), d.dtype),
            grid=grid,
            in_specs=[
                pl.BlockSpec((rb, kIn), lambda i: (i, 0)),   # streamed folded d tiles
                pl.BlockSpec(w_block, lambda i: (0, 0)),     # weights resident in VMEM
                pl.BlockSpec((1, kOut), lambda i: (0, 0)),   # bias resident in VMEM
            ],
            out_specs=pl.BlockSpec((rb, kOut), lambda i: (i, 0)),
            compiler_params=pltpu.CompilerParams(
                dimension_semantics=("parallel",),           # 2nd TC on v7x for multi-tile grids
                vmem_limit_bytes=vmem_limit,
            ),
            cost_estimate=cost,
        )(d2, self.w_arr, self.b2)

        # Un-fold lanes back to rows, drop padding, restore leading dims.
        out = out.reshape(R_pad, Out)
        if R_pad != R:
            out = out[:R]
        return out.reshape(lead + (Out,))


def temporal_decay_ref(d, W, b, diag=False):
    """Pure-JAX reference matching the PyTorch module."""
    if diag:
        W = W * jnp.eye(W.shape[0], dtype=W.dtype)
    z = jnp.matmul(d, W.T) + b
    return jnp.exp(-jnp.maximum(z, 0.0))


if __name__ == "__main__":
    key = jax.random.PRNGKey(0)
    k_d, k_w, k_b, k_wh, k_bh = jax.random.split(key, 5)

    # Small RITS-like shapes: sequence of T steps, batch B, feature size 32.
    T, B = 12, 8
    input_size = 32
    output_size = 32
    hidden_size = 64

    # deterministic "reset_parameters": uniform(-stdv, stdv), stdv = 1/sqrt(output_size)
    stdv = 1.0 / math.sqrt(output_size)
    W = jax.random.uniform(k_w, (output_size, input_size),
                           minval=-stdv, maxval=stdv, dtype=jnp.float32)
    b = jax.random.uniform(k_b, (output_size,),
                           minval=-stdv, maxval=stdv, dtype=jnp.float32)

    # "deltas" input: non-negative time gaps, fused over the whole sequence.
    d_seq = jax.random.uniform(k_d, (T, B, input_size),
                               minval=0.0, maxval=5.0, dtype=jnp.float32)

    # 1) dense path (Out=In=32 -> fold k=4, 128-lane output slab), fused over T*B rows.
    decay_x = TemporalDecayPallas(W, b, diag=False)
    out = jax.block_until_ready(decay_x(d_seq))
    ref = temporal_decay_ref(d_seq, W, b, diag=False)
    assert out.shape == ref.shape
    assert jnp.allclose(out, ref, atol=1e-5, rtol=1e-5), "dense fused mismatch"

    # 2) diag path (RITS x-decay): lane-folded elementwise VPU/EUP kernel, no MXU.
    decay_diag = TemporalDecayPallas(W, b, diag=True)
    out_diag = jax.block_until_ready(decay_diag(d_seq))
    ref_diag = temporal_decay_ref(d_seq, W, b, diag=True)
    assert jnp.allclose(out_diag, ref_diag, atol=1e-5, rtol=1e-5), "diag mismatch"

    # 3) single-step call (B, In): same fixed block shapes -> reuses the compile.
    d_step = d_seq[0]
    out_step = jax.block_until_ready(decay_x(d_step))
    assert jnp.allclose(out_step, ref[0], atol=1e-5, rtol=1e-5), "single-step mismatch"

    # 4) hidden-decay head (Out=64 -> fold k=2) with a small row tile so the
    #    grid has multiple parallel steps and exercises row padding.
    stdv_h = 1.0 / math.sqrt(hidden_size)
    W_h = jax.random.uniform(k_wh, (hidden_size, input_size),
                             minval=-stdv_h, maxval=stdv_h, dtype=jnp.float32)
    b_h = jax.random.uniform(k_bh, (hidden_size,),
                             minval=-stdv_h, maxval=stdv_h, dtype=jnp.float32)
    decay_h = TemporalDecayPallas(W_h, b_h, diag=False, row_block=16)
    out_h = jax.block_until_ready(decay_h(d_seq))
    ref_h = temporal_decay_ref(d_seq, W_h, b_h, diag=False)
    assert out_h.shape == ref_h.shape
    assert jnp.allclose(out_h, ref_h, atol=1e-5, rtol=1e-5), "hidden-decay mismatch"

    print("KERNEL_OK")
</pallas_src>

<mosaic_0001>
module attributes {stable_mosaic.version = 11 : i64} {
  func.func @_dense_decay_kernel(%arg0: i32, %arg1: memref<512x128xf32, #tpu.memory_space<vmem>>, %arg2: memref<128x128xf32, #tpu.memory_space<vmem>>, %arg3: memref<1x128xf32, #tpu.memory_space<vmem>>, %arg4: memref<512x128xf32, #tpu.memory_space<vmem>>) attributes {dimension_semantics = [#tpu.dimension_semantics<parallel>], iteration_bounds = array<i64: 1>, scalar_prefetch = 0 : i64, scratch_operands = 0 : i64, tpu.core_type = #tpu.core_type<tc>, window_params = [{transform_indices = @transform_0, window_bounds = array<i64: 512, 128>}, {pipeline_mode = #tpu.pipeline_mode<synchronous>, transform_indices = @transform_1, window_bounds = array<i64: 128, 128>}, {pipeline_mode = #tpu.pipeline_mode<synchronous>, transform_indices = @transform_2, window_bounds = array<i64: 1, 128>}, {transform_indices = @transform_3, window_bounds = array<i64: 512, 128>}]} {
    %c0 = arith.constant 0 : index
    %c0_0 = arith.constant 0 : index
    %0 = vector.load %arg1[%c0, %c0_0] : memref<512x128xf32, #tpu.memory_space<vmem>>, vector<512x128xf32>
    %c0_1 = arith.constant 0 : index
    %c0_2 = arith.constant 0 : index
    %1 = vector.load %arg2[%c0_1, %c0_2] : memref<128x128xf32, #tpu.memory_space<vmem>>, vector<128x128xf32>
    %cst = arith.constant dense<0.000000e+00> : vector<512x128xf32>
    %2 = tpu.matmul %0, %1, %cst {dimension_numbers = #tpu.dot_dimension_numbers<[1], [0], [0], [1], [0, 0, 1, 1], [], []>} : vector<512x128xf32>, vector<128x128xf32>, vector<512x128xf32> -> vector<512x128xf32>
    %c0_3 = arith.constant 0 : index
    %c0_4 = arith.constant 0 : index
    %3 = vector.load %arg3[%c0_3, %c0_4] : memref<1x128xf32, #tpu.memory_space<vmem>>, vector<1x128xf32>
    %4 = vector.broadcast %3 : vector<1x128xf32> to vector<512x128xf32>
    %5 = arith.addf %2, %4 : vector<512x128xf32>
    %cst_5 = arith.constant 0.000000e+00 : f32
    %6 = vector.broadcast %cst_5 : f32 to vector<512x128xf32>
    %7 = arith.minimumf %5, %6 : vector<512x128xf32>
    %8 = math.exp %7 : vector<512x128xf32>
    %c0_6 = arith.constant 0 : index
    %c0_7 = arith.constant 0 : index
    %9 = vector.load %arg4[%c0_6, %c0_7] : memref<512x128xf32, #tpu.memory_space<vmem>>, vector<512x128xf32>
    tpu.vector_store %arg4[%c0_6, %c0_7], %8 {strides = array<i32>} : memref<512x128xf32, #tpu.memory_space<vmem>>, vector<512x128xf32>,
    return
  }
  func.func @transform_0(%arg0: i32) -> (i32, i32) {
    %c0_i32 = arith.constant 0 : i32
    %c0_i32_0 = arith.constant 0 : i32
    return %arg0, %c0_i32 : i32, i32
  }
  func.func @transform_1(%arg0: i32) -> (i32, i32) {
    %c0_i32 = arith.constant 0 : i32
    %c0_i32_0 = arith.constant 0 : i32
    %c0_i32_1 = arith.constant 0 : i32
    return %c0_i32, %c0_i32_0 : i32, i32
  }
  func.func @transform_2(%arg0: i32) -> (i32, i32) {
    %c0_i32 = arith.constant 0 : i32
    %c0_i32_0 = arith.constant 0 : i32
    %c0_i32_1 = arith.constant 0 : i32
    return %c0_i32, %c0_i32_0 : i32, i32
  }
  func.func @transform_3(%arg0: i32) -> (i32, i32) {
    %c0_i32 = arith.constant 0 : i32
    %c0_i32_0 = arith.constant 0 : i32
    return %arg0, %c0_i32 : i32, i32
  }
}

</mosaic_0001>

<llo_original>
// kernel: tpu_custom_call.1
$region0: #{tpu_custom_call.1}
  #allocation0 [shape = 'u32[]', space=smem, size = 0x4, offset = 0x4, fixed_abs, tag = 'smem constant byte address 0x4 - core index']
  #allocation1 [shape = 'u32[144,128]{1,0:T(1,128)}', space=vmem, size = 0x12000, scoped, tag = 'internal scratch']
  %s0 = inlined_call_operand.hbm [shape: f32[512,128], index: 0, kind: input, shape index: {}]
  %s1 = inlined_call_operand.hbm [shape: f32[128,128], index: 1, kind: input, shape index: {}]
  %s2 = inlined_call_operand.vmem [shape: f32[1,128], index: 2, kind: input, shape index: {}]
  %s3 = inlined_call_operand.hbm [shape: f32[512,128], index: 3, kind: output, shape index: {}]
  %s4 = sld [smem:[#allocation0]]
  $region30: #{tpu_custom_call.1} parent=0
    _
  %s6 = ssub.s32 1, %s4
  %s7 = scalar_select 0, %s6, %s4
  $region1: #{tpu_custom_call.1} parent=0
    #allocation2 [shape = 'u8[262144]{0}', space=vmem, size = 0x40000, scoped, tag = 'input window, operand 0, single buffered']
    #allocation3 [shape = 's32[1]{0}', space=sflag, size = 0x4, scoped, tag = 'scoped memory for tpu_custom_call.1']
    #allocation4 [shape = 's32[1]{0}', space=sflag, size = 0x4, scoped, tag = 'scoped memory for tpu_custom_call.1']
    #allocation5 [shape = 'u8[65536]{0}', space=vmem, size = 0x10000, scoped, tag = 'input window, operand 1, single buffered']
    #allocation6 [shape = 's32[1]{0}', space=sflag, size = 0x4, scoped, tag = 'scoped memory for tpu_custom_call.1']
    #allocation7 [shape = 'u8[262144]{0}', space=vmem, size = 0x40000, scoped, tag = 'output window, operand 0, single buffered']
    %8 = vsyncpa [#allocation3], 0
    %9 = vsyncpa [#allocation6], 0
    %10 = vsyncpa [#allocation4], 0
    // Predicated region
    $region2: #{tpu_custom_call.1} parent=1 // pred_check
      _
    $region3: #{tpu_custom_call.1} parent=1 // pred_check_branch
      %12 = sbr.rel (0) target = $region5
    $region4: #{tpu_custom_call.1} parent=1 // pred_region
      %s14 = ssub.s32 8192, 8192
      %15 = vsyncadd [#allocation3], %s14
      %s16 = sshll.u32 [#allocation2], 4
      %s17 = int_to_ptr.vmem [resolvable:$true] %s16
      %22 = dma.hbm_to_vmem [thread:$0]  %s0, 8192, %s17, [#allocation3], 128, 128, 8
    $region5: #{tpu_custom_call.1} parent=1 // pred_fallthru
      _
    // Predicated region
    $region6: #{tpu_custom_call.1} parent=1 // pred_check
      _
    $region7: #{tpu_custom_call.1} parent=1 // pred_check_branch
      %24 = sbr.rel (0) target = $region9
    $region8: #{tpu_custom_call.1} parent=1 // pred_region
      %s26 = ssub.s32 2048, 2048
      %27 = vsyncadd [#allocation6], %s26
      %s28 = sshll.u32 [#allocation5], 4
      %s29 = int_to_ptr.vmem [resolvable:$true] %s28
      %34 = dma.hbm_to_vmem [thread:$0]  %s1, 2048, %s29, [#allocation6], 128, 128, 8
    $region9: #{tpu_custom_call.1} parent=1 // pred_fallthru
      _
    // Predicated region
    $region10: #{tpu_custom_call.1} parent=1 // pred_check
      _
    $region11: #{tpu_custom_call.1} parent=1 // pred_check_branch
      %36 = sbr.rel (0) target = $region13
    $region12: #{tpu_custom_call.1} parent=1 // pred_region
      _
    $region13: #{tpu_custom_call.1} parent=1 // pred_fallthru
      _
    // Predicated region
    $region14: #{tpu_custom_call.1} parent=1 // pred_check
      _
    $region15: #{tpu_custom_call.1} parent=1 // pred_check_branch
      %38 = sbr.rel (0) target = $region17
    $region16: #{tpu_custom_call.1} parent=1 // pred_region
      %39 = dma.done [#allocation3], 8192
    $region17: #{tpu_custom_call.1} parent=1 // pred_fallthru
      _
    // Predicated region
    $region18: #{tpu_custom_call.1} parent=1 // pred_check
      _
    $region19: #{tpu_custom_call.1} parent=1 // pred_check_branch
      %41 = sbr.rel (0) target = $region21
    $region20: #{tpu_custom_call.1} parent=1 // pred_region
      %42 = dma.done [#allocation6], 2048
    $region21: #{tpu_custom_call.1} parent=1 // pred_fallthru
      _
    %v43 = vld [vmem:[#allocation2] sm:$0xff]
    %v44 = vld [vmem:[#allocation2 + $0x8] sm:$0xff]
    %v45 = vld [vmem:[#allocation2 + $0x10] sm:$0xff]
    %v46 = vld [vmem:[#allocation2 + $0x18] sm:$0xff]
    %v47 = vld [vmem:[#allocation2 + $0x20] sm:$0xff]
    %v48 = vld [vmem:[#allocation2 + $0x28] sm:$0xff]
    %v49 = vld [vmem:[#allocation2 + $0x30] sm:$0xff]
    %v50 = vld [vmem:[#allocation2 + $0x38] sm:$0xff]
    %v51 = vld [vmem:[#allocation2 + $0x40] sm:$0xff]
    %v52 = vld [vmem:[#allocation2 + $0x48] sm:$0xff]
    %v53 = vld [vmem:[#allocation2 + $0x50] sm:$0xff]
    %v54 = vld [vmem:[#allocation2 + $0x58] sm:$0xff]
    %v55 = vld [vmem:[#allocation2 + $0x60] sm:$0xff]
    %v56 = vld [vmem:[#allocation2 + $0x68] sm:$0xff]
    %v57 = vld [vmem:[#allocation2 + $0x70] sm:$0xff]
    %v58 = vld [vmem:[#allocation2 + $0x78] sm:$0xff]
    %v59 = vld [vmem:[#allocation2 + $0x80] sm:$0xff]
    %v60 = vld [vmem:[#allocation2 + $0x88] sm:$0xff]
    %v61 = vld [vmem:[#allocation2 + $0x90] sm:$0xff]
    %v62 = vld [vmem:[#allocation2 + $0x98] sm:$0xff]
    %v63 = vld [vmem:[#allocation2 + $0xa0] sm:$0xff]
    %v64 = vld [vmem:[#allocation2 + $0xa8] sm:$0xff]
    %v65 = vld [vmem:[#allocation2 + $0xb0] sm:$0xff]
    %v66 = vld [vmem:[#allocation2 + $0xb8] sm:$0xff]
    %v67 = vld [vmem:[#allocation2 + $0xc0] sm:$0xff]
    %v68 = vld [vmem:[#allocation2 + $0xc8] sm:$0xff]
    %v69 = vld [vmem:[#allocation2 + $0xd0] sm:$0xff]
    %v70 = vld [vmem:[#allocation2 + $0xd8] sm:$0xff]
    %v71 = vld [vmem:[#allocation2 + $0xe0] sm:$0xff]
    %v72 = vld [vmem:[#allocation2 + $0xe8] sm:$0xff]
    %v73 = vld [vmem:[#allocation2 + $0xf0] sm:$0xff]
    %v74 = vld [vmem:[#allocation2 + $0xf8] sm:$0xff]
    %v75 = vld [vmem:[#allocation2 + $0x100] sm:$0xff]
    %v76 = vld [vmem:[#allocation2 + $0x108] sm:$0xff]
    %v77 = vld [vmem:[#allocation2 + $0x110] sm:$0xff]
    %v78 = vld [vmem:[#allocation2 + $0x118] sm:$0xff]
    %v79 = vld [vmem:[#allocation2 + $0x120] sm:$0xff]
    %v80 = vld [vmem:[#allocation2 + $0x128] sm:$0xff]
    %v81 = vld [vmem:[#allocation2 + $0x130] sm:$0xff]
    %v82 = vld [vmem:[#allocation2 + $0x138] sm:$0xff]
    %v83 = vld [vmem:[#allocation2 + $0x140] sm:$0xff]
    %v84 = vld [vmem:[#allocation2 + $0x148] sm:$0xff]
    %v85 = vld [vmem:[#allocation2 + $0x150] sm:$0xff]
    %v86 = vld [vmem:[#allocation2 + $0x158] sm:$0xff]
    %v87 = vld [vmem:[#allocation2 + $0x160] sm:$0xff]
    %v88 = vld [vmem:[#allocation2 + $0x168] sm:$0xff]
    %v89 = vld [vmem:[#allocation2 + $0x170] sm:$0xff]
    %v90 = vld [vmem:[#allocation2 + $0x178] sm:$0xff]
    %v91 = vld [vmem:[#allocation2 + $0x180] sm:$0xff]
    %v92 = vld [vmem:[#allocation2 + $0x188] sm:$0xff]
    %v93 = vld [vmem:[#allocation2 + $0x190] sm:$0xff]
    %v94 = vld [vmem:[#allocation2 + $0x198] sm:$0xff]
    %v95 = vld [vmem:[#allocation2 + $0x1a0] sm:$0xff]
    %v96 = vld [vmem:[#allocation2 + $0x1a8] sm:$0xff]
    %v97 = vld [vmem:[#allocation2 + $0x1b0] sm:$0xff]
    %v98 = vld [vmem:[#allocation2 + $0x1b8] sm:$0xff]
    %v99 = vld [vmem:[#allocation2 + $0x1c0] sm:$0xff]
    %v100 = vld [vmem:[#allocation2 + $0x1c8] sm:$0xff]
    %v101 = vld [vmem:[#allocation2 + $0x1d0] sm:$0xff]
    %v102 = vld [vmem:[#allocation2 + $0x1d8] sm:$0xff]
    %v103 = vld [vmem:[#allocation2 + $0x1e0] sm:$0xff]
    %v104 = vld [vmem:[#allocation2 + $0x1e8] sm:$0xff]
    %v105 = vld [vmem:[#allocation2 + $0x1f0] sm:$0xff]
    %v106 = vld [vmem:[#allocation2 + $0x1f8] sm:$0xff]
    %v107 = vld [vmem:[#allocation5] sm:$0xff]
    %v108 = vld [vmem:[#allocation5 + $0x8] sm:$0xff]
    %v109 = vld [vmem:[#allocation5 + $0x10] sm:$0xff]
    %v110 = vld [vmem:[#allocation5 + $0x18] sm:$0xff]
    %v111 = vld [vmem:[#allocation5 + $0x20] sm:$0xff]
    %v112 = vld [vmem:[#allocation5 + $0x28] sm:$0xff]
    %v113 = vld [vmem:[#allocation5 + $0x30] sm:$0xff]
    %v114 = vld [vmem:[#allocation5 + $0x38] sm:$0xff]
    %v115 = vld [vmem:[#allocation5 + $0x40] sm:$0xff]
    %v116 = vld [vmem:[#allocation5 + $0x48] sm:$0xff]
    %v117 = vld [vmem:[#allocation5 + $0x50] sm:$0xff]
    %v118 = vld [vmem:[#allocation5 + $0x58] sm:$0xff]
    %v119 = vld [vmem:[#allocation5 + $0x60] sm:$0xff]
    %v120 = vld [vmem:[#allocation5 + $0x68] sm:$0xff]
    %v121 = vld [vmem:[#allocation5 + $0x70] sm:$0xff]
    %v122 = vld [vmem:[#allocation5 + $0x78] sm:$0xff]
    %v123 = vld [vmem:[%s2] sm:$0x1]
    %v125 = vlaneseq
    %v126 = vshrl.u32 %v125, 7
    %v127 = vsub.s32 0, %v126
    %v128 = vrot.slane %v123, %v127
    %130 = vmatprep.subr.mxu0 0.0
    %131 = vmatpush1.msra.mxu0 %v107
    %132 = vmatprep.subr.mxu0 0.0
    %133 = vmatpush1.msra.mxu0 %v108
    %134 = vmatprep.subr.mxu0 0.0
    %135 = vmatpush1.msra.mxu0 %v109
    %136 = vmatprep.subr.mxu0 0.0
    %137 = vmatpush1.msra.mxu0 %v110
    %138 = vmatprep.subr.mxu0 0.0
    %139 = vmatpush1.msra.mxu0 %v111
    %140 = vmatprep.subr.mxu0 0.0
    %141 = vmatpush1.msra.mxu0 %v112
    %142 = vmatprep.subr.mxu0 0.0
    %143 = vmatpush1.msra.mxu0 %v113
    %144 = vmatprep.subr.mxu0 0.0
    %145 = vmatpush1.msra.mxu0 %v114
    %146 = vmatprep.subr.mxu0 0.0
    %147 = vmatpush1.msra.mxu0 %v115
    %148 = vmatprep.subr.mxu0 0.0
    %149 = vmatpush1.msra.mxu0 %v116
    %150 = vmatprep.subr.mxu0 0.0
    %151 = vmatpush1.msra.mxu0 %v117
    %152 = vmatprep.subr.mxu0 0.0
    %153 = vmatpush1.msra.mxu0 %v118
    %154 = vmatprep.subr.mxu0 0.0
    %155 = vmatpush1.msra.mxu0 %v119
    %156 = vmatprep.subr.mxu0 0.0
    %157 = vmatpush1.msra.mxu0 %v120
    %158 = vmatprep.subr.mxu0 0.0
    %159 = vmatpush1.msra.mxu0 %v121
    %160 = vmatprep.subr.mxu0 0.0
    %161 = vmatpush1.msra.mxu0 %v122
    %162 = vmatprep.subr.mxu0 0.0
    %163 = vmatpush1.msra.mxu0 0.0
    %164 = vmatprep.subr.mxu0 0.0
    %165 = vmatpush1.msra.mxu0 0.0
    %166 = vmatprep.subr.mxu0 0.0
    %167 = vmatpush1.msra.mxu0 0.0
    %168 = vmatprep.subr.mxu0 0.0
    %169 = vmatpush1.msra.mxu0 0.0
    %170 = vmatprep.subr.mxu0 0.0
    %171 = vmatpush1.msra.mxu0 0.0
    %172 = vmatprep.subr.mxu0 0.0
    %173 = vmatpush1.msra.mxu0 0.0
    %174 = vmatprep.subr.mxu0 0.0
    %175 = vmatpush1.msra.mxu0 0.0
    %176 = vmatprep.subr.mxu0 0.0
    %177 = vmatpush1.msra.mxu0 0.0
    %178 = vmatprep.subr.mxu0 0.0
    %179 = vmatpush1.msra.mxu0 0.0
    %180 = vmatprep.subr.mxu0 0.0
    %181 = vmatpush1.msra.mxu0 0.0
    %182 = vmatprep.subr.mxu0 0.0
    %183 = vmatpush1.msra.mxu0 0.0
    %184 = vmatprep.subr.mxu0 0.0
    %185 = vmatpush1.msra.mxu0 0.0
    %186 = vmatprep.subr.mxu0 0.0
    %187 = vmatpush1.msra.mxu0 0.0
    %188 = vmatprep.subr.mxu0 0.0
    %189 = vmatpush1.msra.mxu0 0.0
    %190 = vmatprep.subr.mxu0 0.0
    %191 = vmatpush1.msra.mxu0 0.0
    %192 = vmatprep.subr.mxu0 0.0
    %193 = vmatpush1.msra.mxu0 0.0
    %194 = vmatprep.mubr.f32.mxu0 0.0
    %195 = vmatmul.mubr.f32.gmra.mrb[0].mxu0 %v43
    %v196 = vpop.f32.mrb[0].mxu0
    %v197 = vadd.f32 %v128, %v196
    %v198 = vpop.f32.mrb[0].mxu0
    %199 = vmatprep.mubr.f32.mxu0 0.0
    %200 = vmatmul.mubr.f32.gmra.mrb[0].mxu0 %v44
    %v201 = vpop.f32.mrb[0].mxu0
    %v202 = vadd.f32 %v128, %v201
    %v203 = vpop.f32.mrb[0].mxu0
    %204 = vmatprep.mubr.f32.mxu0 0.0
    %205 = vmatmul.mubr.f32.gmra.mrb[0].mxu0 %v45
    %v206 = vpop.f32.mrb[0].mxu0
    %v207 = vadd.f32 %v128, %v206
    %v208 = vpop.f32.mrb[0].mxu0
    %209 = vmatprep.mubr.f32.mxu0 0.0
    %210 = vmatmul.mubr.f32.gmra.mrb[0].mxu0 %v46
    %v211 = vpop.f32.mrb[0].mxu0
    %v212 = vadd.f32 %v128, %v211
    %v213 = vpop.f32.mrb[0].mxu0
    %214 = vmatprep.mubr.f32.mxu0 0.0
    %215 = vmatmul.mubr.f32.gmra.mrb[0].mxu0 %v47
    %v216 = vpop.f32.mrb[0].mxu0
    %v217 = vadd.f32 %v128, %v216
    %v218 = vpop.f32.mrb[0].mxu0
    %219 = vmatprep.mubr.f32.mxu0 0.0
    %220 = vmatmul.mubr.f32.gmra.mrb[0].mxu0 %v48
    %v221 = vpop.f32.mrb[0].mxu0
    %v222 = vadd.f32 %v128, %v221
    %v223 = vpop.f32.mrb[0].mxu0
    %224 = vmatprep.mubr.f32.mxu0 0.0
    %225 = vmatmul.mubr.f32.gmra.mrb[0].mxu0 %v49
    %v226 = vpop.f32.mrb[0].mxu0
    %v227 = vadd.f32 %v128, %v226
    %v228 = vpop.f32.mrb[0].mxu0
    %229 = vmatprep.mubr.f32.mxu0 0.0
    %230 = vmatmul.mubr.f32.gmra.mrb[0].mxu0 %v50
    %v231 = vpop.f32.mrb[0].mxu0
    %v232 = vadd.f32 %v128, %v231
    %v233 = vpop.f32.mrb[0].mxu0
    %234 = vmatprep.mubr.f32.mxu0 0.0
    %235 = vmatmul.mubr.f32.gmra.mrb[0].mxu0 %v51
    %v236 = vpop.f32.mrb[0].mxu0
    %v237 = vadd.f32 %v128, %v236
    %v238 = vpop.f32.mrb[0].mxu0
    %239 = vmatprep.mubr.f32.mxu0 0.0
    %240 = vmatmul.mubr.f32.gmra.mrb[0].mxu0 %v52
    %v241 = vpop.f32.mrb[0].mxu0
    %v242 = vadd.f32 %v128, %v241
    %v243 = vpop.f32.mrb[0].mxu0
    %244 = vmatprep.mubr.f32.mxu0 0.0
    %245 = vmatmul.mubr.f32.gmra.mrb[0].mxu0 %v53
    %v246 = vpop.f32.mrb[0].mxu0
    %v247 = vadd.f32 %v128, %v246
    %v248 = vpop.f32.mrb[0].mxu0
    %249 = vmatprep.mubr.f32.mxu0 0.0
    %250 = vmatmul.mubr.f32.gmra.mrb[0].mxu0 %v54
    %v251 = vpop.f32.mrb[0].mxu0
    %v252 = vadd.f32 %v128, %v251
    %v253 = vpop.f32.mrb[0].mxu0
    %254 = vmatprep.mubr.f32.mxu0 0.0
    %255 = vmatmul.mubr.f32.gmra.mrb[0].mxu0 %v55
    %v256 = vpop.f32.mrb[0].mxu0
    %v257 = vadd.f32 %v128, %v256
    %v258 = vpop.f32.mrb[0].mxu0
    %259 = vmatprep.mubr.f32.mxu0 0.0
    %260 = vmatmul.mubr.f32.gmra.mrb[0].mxu0 %v56
    %v261 = vpop.f32.mrb[0].mxu0
    %v262 = vadd.f32 %v128, %v261
    %v263 = vpop.f32.mrb[0].mxu0
    %264 = vmatprep.mubr.f32.mxu0 0.0
    %265 = vmatmul.mubr.f32.gmra.mrb[0].mxu0 %v57
    %v266 = vpop.f32.mrb[0].mxu0
    %v267 = vadd.f32 %v128, %v266
    %v268 = vpop.f32.mrb[0].mxu0
    %269 = vmatprep.mubr.f32.mxu0 0.0
    %270 = vmatmul.mubr.f32.gmra.mrb[0].mxu0 %v58
    %v271 = vpop.f32.mrb[0].mxu0
    %v272 = vadd.f32 %v128, %v271
    %v273 = vpop.f32.mrb[0].mxu0
    %274 = vmatprep.mubr.f32.mxu0 0.0
    %275 = vmatmul.mubr.f32.gmra.mrb[0].mxu0 %v59
    %v276 = vpop.f32.mrb[0].mxu0
    %v277 = vadd.f32 %v128, %v276
    %v278 = vpop.f32.mrb[0].mxu0
    %279 = vmatprep.mubr.f32.mxu0 0.0
    %280 = vmatmul.mubr.f32.gmra.mrb[0].mxu0 %v60
    %v281 = vpop.f32.mrb[0].mxu0
    %v282 = vadd.f32 %v128, %v281
    %v283 = vpop.f32.mrb[0].mxu0
    %284 = vmatprep.mubr.f32.mxu0 0.0
    %285 = vmatmul.mubr.f32.gmra.mrb[0].mxu0 %v61
    %v286 = vpop.f32.mrb[0].mxu0
    %v287 = vadd.f32 %v128, %v286
    %v288 = vpop.f32.mrb[0].mxu0
    %289 = vmatprep.mubr.f32.mxu0 0.0
    %290 = vmatmul.mubr.f32.gmra.mrb[0].mxu0 %v62
    %v291 = vpop.f32.mrb[0].mxu0
    %v292 = vadd.f32 %v128, %v291
    %v293 = vpop.f32.mrb[0].mxu0
    %294 = vmatprep.mubr.f32.mxu0 0.0
    %295 = vmatmul.mubr.f32.gmra.mrb[0].mxu0 %v63
    %v296 = vpop.f32.mrb[0].mxu0
    %v297 = vadd.f32 %v128, %v296
    %v298 = vpop.f32.mrb[0].mxu0
    %299 = vmatprep.mubr.f32.mxu0 0.0
    %300 = vmatmul.mubr.f32.gmra.mrb[0].mxu0 %v64
    %v301 = vpop.f32.mrb[0].mxu0
    %v302 = vadd.f32 %v128, %v301
    %v303 = vpop.f32.mrb[0].mxu0
    %304 = vmatprep.mubr.f32.mxu0 0.0
    %305 = vmatmul.mubr.f32.gmra.mrb[0].mxu0 %v65
    %v306 = vpop.f32.mrb[0].mxu0
    %v307 = vadd.f32 %v128, %v306
    %v308 = vpop.f32.mrb[0].mxu0
    %309 = vmatprep.mubr.f32.mxu0 0.0
    %310 = vmatmul.mubr.f32.gmra.mrb[0].mxu0 %v66
    %v311 = vpop.f32.mrb[0].mxu0
    %v312 = vadd.f32 %v128, %v311
    %v313 = vpop.f32.mrb[0].mxu0
    %314 = vmatprep.mubr.f32.mxu0 0.0
    %315 = vmatmul.mubr.f32.gmra.mrb[0].mxu0 %v67
    %v316 = vpop.f32.mrb[0].mxu0
    %v317 = vadd.f32 %v128, %v316
    %v318 = vpop.f32.mrb[0].mxu0
    %319 = vmatprep.mubr.f32.mxu0 0.0
    %320 = vmatmul.mubr.f32.gmra.mrb[0].mxu0 %v68
    %v321 = vpop.f32.mrb[0].mxu0
    %v322 = vadd.f32 %v128, %v321
    %v323 = vpop.f32.mrb[0].mxu0
    %324 = vmatprep.mubr.f32.mxu0 0.0
    %325 = vmatmul.mubr.f32.gmra.mrb[0].mxu0 %v69
    %v326 = vpop.f32.mrb[0].mxu0
    %v327 = vadd.f32 %v128, %v326
    %v328 = vpop.f32.mrb[0].mxu0
    %329 = vmatprep.mubr.f32.mxu0 0.0
    %330 = vmatmul.mubr.f32.gmra.mrb[0].mxu0 %v70
    %v331 = vpop.f32.mrb[0].mxu0
    %v332 = vadd.f32 %v128, %v331
    %v333 = vpop.f32.mrb[0].mxu0
    %334 = vmatprep.mubr.f32.mxu0 0.0
    %335 = vmatmul.mubr.f32.gmra.mrb[0].mxu0 %v71
    %v336 = vpop.f32.mrb[0].mxu0
    %v337 = vadd.f32 %v128, %v336
    %v338 = vpop.f32.mrb[0].mxu0
    %339 = vmatprep.mubr.f32.mxu0 0.0
    %340 = vmatmul.mubr.f32.gmra.mrb[0].mxu0 %v72
    %v341 = vpop.f32.mrb[0].mxu0
    %v342 = vadd.f32 %v128, %v341
    %v343 = vpop.f32.mrb[0].mxu0
    %344 = vmatprep.mubr.f32.mxu0 0.0
    %345 = vmatmul.mubr.f32.gmra.mrb[0].mxu0 %v73
    %v346 = vpop.f32.mrb[0].mxu0
    %v347 = vadd.f32 %v128, %v346
    %v348 = vpop.f32.mrb[0].mxu0
    %349 = vmatprep.mubr.f32.mxu0 0.0
    %350 = vmatmul.mubr.f32.gmra.mrb[0].mxu0 %v74
    %v351 = vpop.f32.mrb[0].mxu0
    %v352 = vadd.f32 %v128, %v351
    %v353 = vpop.f32.mrb[0].mxu0
    %354 = vmatprep.mubr.f32.mxu0 0.0
    %355 = vmatmul.mubr.f32.gmra.mrb[0].mxu0 %v75
    %v356 = vpop.f32.mrb[0].mxu0
    %v357 = vadd.f32 %v128, %v356
    %v358 = vpop.f32.mrb[0].mxu0
    %359 = vmatprep.mubr.f32.mxu0 0.0
    %360 = vmatmul.mubr.f32.gmra.mrb[0].mxu0 %v76
    %v361 = vpop.f32.mrb[0].mxu0
    %v362 = vadd.f32 %v128, %v361
    %v363 = vpop.f32.mrb[0].mxu0
    %364 = vmatprep.mubr.f32.mxu0 0.0
    %365 = vmatmul.mubr.f32.gmra.mrb[0].mxu0 %v77
    %v366 = vpop.f32.mrb[0].mxu0
    %v367 = vadd.f32 %v128, %v366
    %v368 = vpop.f32.mrb[0].mxu0
    %369 = vmatprep.mubr.f32.mxu0 0.0
    %370 = vmatmul.mubr.f32.gmra.mrb[0].mxu0 %v78
    %v371 = vpop.f32.mrb[0].mxu0
    %v372 = vadd.f32 %v128, %v371
    %v373 = vpop.f32.mrb[0].mxu0
    %374 = vmatprep.mubr.f32.mxu0 0.0
    %375 = vmatmul.mubr.f32.gmra.mrb[0].mxu0 %v79
    %v376 = vpop.f32.mrb[0].mxu0
    %v377 = vadd.f32 %v128, %v376
    %v378 = vpop.f32.mrb[0].mxu0
    %379 = vmatprep.mubr.f32.mxu0 0.0
    %380 = vmatmul.mubr.f32.gmra.mrb[0].mxu0 %v80
    %v381 = vpop.f32.mrb[0].mxu0
    %v382 = vadd.f32 %v128, %v381
    %v383 = vpop.f32.mrb[0].mxu0
    %384 = vmatprep.mubr.f32.mxu0 0.0
    %385 = vmatmul.mubr.f32.gmra.mrb[0].mxu0 %v81
    %v386 = vpop.f32.mrb[0].mxu0
    %v387 = vadd.f32 %v128, %v386
    %v388 = vpop.f32.mrb[0].mxu0
    %389 = vmatprep.mubr.f32.mxu0 0.0
    %390 = vmatmul.mubr.f32.gmra.mrb[0].mxu0 %v82
    %v391 = vpop.f32.mrb[0].mxu0
    %v392 = vadd.f32 %v128, %v391
    %v393 = vpop.f32.mrb[0].mxu0
    %394 = vmatprep.mubr.f32.mxu0 0.0
    %395 = vmatmul.mubr.f32.gmra.mrb[0].mxu0 %v83
    %v396 = vpop.f32.mrb[0].mxu0
    %v397 = vadd.f32 %v128, %v396
    %v398 = vpop.f32.mrb[0].mxu0
    %399 = vmatprep.mubr.f32.mxu0 0.0
    %400 = vmatmul.mubr.f32.gmra.mrb[0].mxu0 %v84
    %v401 = vpop.f32.mrb[0].mxu0
    %v402 = vadd.f32 %v128, %v401
    %v403 = vpop.f32.mrb[0].mxu0
    %404 = vmatprep.mubr.f32.mxu0 0.0
    %405 = vmatmul.mubr.f32.gmra.mrb[0].mxu0 %v85
    %v406 = vpop.f32.mrb[0].mxu0
    %v407 = vadd.f32 %v128, %v406
    %v408 = vpop.f32.mrb[0].mxu0
    %409 = vmatprep.mubr.f32.mxu0 0.0
    %410 = vmatmul.mubr.f32.gmra.mrb[0].mxu0 %v86
    %v411 = vpop.f32.mrb[0].mxu0
    %v412 = vadd.f32 %v128, %v411
    %v413 = vpop.f32.mrb[0].mxu0
    %414 = vmatprep.mubr.f32.mxu0 0.0
    %415 = vmatmul.mubr.f32.gmra.mrb[0].mxu0 %v87
    %v416 = vpop.f32.mrb[0].mxu0
    %v417 = vadd.f32 %v128, %v416
    %v418 = vpop.f32.mrb[0].mxu0
    %419 = vmatprep.mubr.f32.mxu0 0.0
    %420 = vmatmul.mubr.f32.gmra.mrb[0].mxu0 %v88
    %v421 = vpop.f32.mrb[0].mxu0
    %v422 = vadd.f32 %v128, %v421
    %v423 = vpop.f32.mrb[0].mxu0
    %424 = vmatprep.mubr.f32.mxu0 0.0
    %425 = vmatmul.mubr.f32.gmra.mrb[0].mxu0 %v89
    %v426 = vpop.f32.mrb[0].mxu0
    %v427 = vadd.f32 %v128, %v426
    %v428 = vpop.f32.mrb[0].mxu0
    %429 = vmatprep.mubr.f32.mxu0 0.0
    %430 = vmatmul.mubr.f32.gmra.mrb[0].mxu0 %v90
    %v431 = vpop.f32.mrb[0].mxu0
    %v432 = vadd.f32 %v128, %v431
    %v433 = vpop.f32.mrb[0].mxu0
    %434 = vmatprep.mubr.f32.mxu0 0.0
    %435 = vmatmul.mubr.f32.gmra.mrb[0].mxu0 %v91
    %v436 = vpop.f32.mrb[0].mxu0
    %v437 = vadd.f32 %v128, %v436
    %v438 = vpop.f32.mrb[0].mxu0
    %439 = vmatprep.mubr.f32.mxu0 0.0
    %440 = vmatmul.mubr.f32.gmra.mrb[0].mxu0 %v92
    %v441 = vpop.f32.mrb[0].mxu0
    %v442 = vadd.f32 %v128, %v441
    %v443 = vpop.f32.mrb[0].mxu0
    %444 = vmatprep.mubr.f32.mxu0 0.0
    %445 = vmatmul.mubr.f32.gmra.mrb[0].mxu0 %v93
    %v446 = vpop.f32.mrb[0].mxu0
    %v447 = vadd.f32 %v128, %v446
    %v448 = vpop.f32.mrb[0].mxu0
    %449 = vmatprep.mubr.f32.mxu0 0.0
    %450 = vmatmul.mubr.f32.gmra.mrb[0].mxu0 %v94
    %v451 = vpop.f32.mrb[0].mxu0
    %v452 = vadd.f32 %v128, %v451
    %v453 = vpop.f32.mrb[0].mxu0
    %454 = vmatprep.mubr.f32.mxu0 0.0
    %455 = vmatmul.mubr.f32.gmra.mrb[0].mxu0 %v95
    %v456 = vpop.f32.mrb[0].mxu0
    %v457 = vadd.f32 %v128, %v456
    %v458 = vpop.f32.mrb[0].mxu0
    %459 = vmatprep.mubr.f32.mxu0 0.0
    %460 = vmatmul.mubr.f32.gmra.mrb[0].mxu0 %v96
    %v461 = vpop.f32.mrb[0].mxu0
    %v462 = vadd.f32 %v128, %v461
    %v463 = vpop.f32.mrb[0].mxu0
    %464 = vmatprep.mubr.f32.mxu0 0.0
    %465 = vmatmul.mubr.f32.gmra.mrb[0].mxu0 %v97
    %v466 = vpop.f32.mrb[0].mxu0
    %v467 = vadd.f32 %v128, %v466
    %v468 = vpop.f32.mrb[0].mxu0
    %469 = vmatprep.mubr.f32.mxu0 0.0
    %470 = vmatmul.mubr.f32.gmra.mrb[0].mxu0 %v98
    %v471 = vpop.f32.mrb[0].mxu0
    %v472 = vadd.f32 %v128, %v471
    %v473 = vpop.f32.mrb[0].mxu0
    %474 = vmatprep.mubr.f32.mxu0 0.0
    %475 = vmatmul.mubr.f32.gmra.mrb[0].mxu0 %v99
    %v476 = vpop.f32.mrb[0].mxu0
    %v477 = vadd.f32 %v128, %v476
    %v478 = vpop.f32.mrb[0].mxu0
    %479 = vmatprep.mubr.f32.mxu0 0.0
    %480 = vmatmul.mubr.f32.gmra.mrb[0].mxu0 %v100
    %v481 = vpop.f32.mrb[0].mxu0
    %v482 = vadd.f32 %v128, %v481
    %v483 = vpop.f32.mrb[0].mxu0
    %484 = vmatprep.mubr.f32.mxu0 0.0
    %485 = vmatmul.mubr.f32.gmra.mrb[0].mxu0 %v101
    %v486 = vpop.f32.mrb[0].mxu0
    %v487 = vadd.f32 %v128, %v486
    %v488 = vpop.f32.mrb[0].mxu0
    %489 = vmatprep.mubr.f32.mxu0 0.0
    %490 = vmatmul.mubr.f32.gmra.mrb[0].mxu0 %v102
    %v491 = vpop.f32.mrb[0].mxu0
    %v492 = vadd.f32 %v128, %v491
    %v493 = vpop.f32.mrb[0].mxu0
    %494 = vmatprep.mubr.f32.mxu0 0.0
    %495 = vmatmul.mubr.f32.gmra.mrb[0].mxu0 %v103
    %v496 = vpop.f32.mrb[0].mxu0
    %v497 = vadd.f32 %v128, %v496
    %v498 = vpop.f32.mrb[0].mxu0
    %499 = vmatprep.mubr.f32.mxu0 0.0
    %500 = vmatmul.mubr.f32.gmra.mrb[0].mxu0 %v104
    %v501 = vpop.f32.mrb[0].mxu0
    %v502 = vadd.f32 %v128, %v501
    %v503 = vpop.f32.mrb[0].mxu0
    %504 = vmatprep.mubr.f32.mxu0 0.0
    %505 = vmatmul.mubr.f32.gmra.mrb[0].mxu0 %v105
    %v506 = vpop.f32.mrb[0].mxu0
    %v507 = vadd.f32 %v128, %v506
    %v508 = vpop.f32.mrb[0].mxu0
    %509 = vmatprep.mubr.f32.mxu0 0.0
    %510 = vmatmul.mubr.f32.gmra.mrb[0].mxu0 %v106
    %v511 = vpop.f32.mrb[0].mxu0
    %v512 = vadd.f32 %v128, %v511
    %v513 = vpop.f32.mrb[0].mxu0
    %514 = vdwg.mxu0
    %v515 = vmin.f32 %v197, 0.0
    %v516 = vmin.f32 %v202, 0.0
    %v517 = vmin.f32 %v207, 0.0
    %v518 = vmin.f32 %v212, 0.0
    %v519 = vmin.f32 %v217, 0.0
    %v520 = vmin.f32 %v222, 0.0
    %v521 = vmin.f32 %v227, 0.0
    %v522 = vmin.f32 %v232, 0.0
    %v523 = vmin.f32 %v237, 0.0
    %v524 = vmin.f32 %v242, 0.0
    %v525 = vmin.f32 %v247, 0.0
    %v526 = vmin.f32 %v252, 0.0
    %v527 = vmin.f32 %v257, 0.0
    %v528 = vmin.f32 %v262, 0.0
    %v529 = vmin.f32 %v267, 0.0
    %v530 = vmin.f32 %v272, 0.0
    %v531 = vmin.f32 %v277, 0.0
    %v532 = vmin.f32 %v282, 0.0
    %v533 = vmin.f32 %v287, 0.0
    %v534 = vmin.f32 %v292, 0.0
    %v535 = vmin.f32 %v297, 0.0
    %v536 = vmin.f32 %v302, 0.0
    %v537 = vmin.f32 %v307, 0.0
    %v538 = vmin.f32 %v312, 0.0
    %v539 = vmin.f32 %v317, 0.0
    %v540 = vmin.f32 %v322, 0.0
    %v541 = vmin.f32 %v327, 0.0
    %v542 = vmin.f32 %v332, 0.0
    %v543 = vmin.f32 %v337, 0.0
    %v544 = vmin.f32 %v342, 0.0
    %v545 = vmin.f32 %v347, 0.0
    %v546 = vmin.f32 %v352, 0.0
    %v547 = vmin.f32 %v357, 0.0
    %v548 = vmin.f32 %v362, 0.0
    %v549 = vmin.f32 %v367, 0.0
    %v550 = vmin.f32 %v372, 0.0
    %v551 = vmin.f32 %v377, 0.0
    %v552 = vmin.f32 %v382, 0.0
    %v553 = vmin.f32 %v387, 0.0
    %v554 = vmin.f32 %v392, 0.0
    %v555 = vmin.f32 %v397, 0.0
    %v556 = vmin.f32 %v402, 0.0
    %v557 = vmin.f32 %v407, 0.0
    %v558 = vmin.f32 %v412, 0.0
    %v559 = vmin.f32 %v417, 0.0
    %v560 = vmin.f32 %v422, 0.0
    %v561 = vmin.f32 %v427, 0.0
    %v562 = vmin.f32 %v432, 0.0
    %v563 = vmin.f32 %v437, 0.0
    %v564 = vmin.f32 %v442, 0.0
    %v565 = vmin.f32 %v447, 0.0
    %v566 = vmin.f32 %v452, 0.0
    %v567 = vmin.f32 %v457, 0.0
    %v568 = vmin.f32 %v462, 0.0
    %v569 = vmin.f32 %v467, 0.0
    %v570 = vmin.f32 %v472, 0.0
    %v571 = vmin.f32 %v477, 0.0
    %v572 = vmin.f32 %v482, 0.0
    %v573 = vmin.f32 %v487, 0.0
    %v574 = vmin.f32 %v492, 0.0
    %v575 = vmin.f32 %v497, 0.0
    %v576 = vmin.f32 %v502, 0.0
    %v577 = vmin.f32 %v507, 0.0
    %v578 = vmin.f32 %v512, 0.0
    %v579 = vmul.f32 %v515, 1.442695
    %v580 = vpow.pop %v579
    %v581 = vmul.f32 %v516, 1.442695
    %v582 = vpow.pop %v581
    %v583 = vmul.f32 %v517, 1.442695
    %v584 = vpow.pop %v583
    %v585 = vmul.f32 %v518, 1.442695
    %v586 = vpow.pop %v585
    %v587 = vmul.f32 %v519, 1.442695
    %v588 = vpow.pop %v587
    %v589 = vmul.f32 %v520, 1.442695
    %v590 = vpow.pop %v589
    %v591 = vmul.f32 %v521, 1.442695
    %v592 = vpow.pop %v591
    %v593 = vmul.f32 %v522, 1.442695
    %v594 = vpow.pop %v593
    %v595 = vmul.f32 %v523, 1.442695
    %v596 = vpow.pop %v595
    %v597 = vmul.f32 %v524, 1.442695
    %v598 = vpow.pop %v597
    %v599 = vmul.f32 %v525, 1.442695
    %v600 = vpow.pop %v599
    %v601 = vmul.f32 %v526, 1.442695
    %v602 = vpow.pop %v601
    %v603 = vmul.f32 %v527, 1.442695
    %v604 = vpow.pop %v603
    %v605 = vmul.f32 %v528, 1.442695
    %v606 = vpow.pop %v605
    %v607 = vmul.f32 %v529, 1.442695
    %v608 = vpow.pop %v607
    %v609 = vmul.f32 %v530, 1.442695
    %v610 = vpow.pop %v609
    %v611 = vmul.f32 %v531, 1.442695
    %v612 = vpow.pop %v611
    %v613 = vmul.f32 %v532, 1.442695
    %v614 = vpow.pop %v613
    %v615 = vmul.f32 %v533, 1.442695
    %v616 = vpow.pop %v615
    %v617 = vmul.f32 %v534, 1.442695
    %v618 = vpow.pop %v617
    %v619 = vmul.f32 %v535, 1.442695
    %v620 = vpow.pop %v619
    %v621 = vmul.f32 %v536, 1.442695
    %v622 = vpow.pop %v621
    %v623 = vmul.f32 %v537, 1.442695
    %v624 = vpow.pop %v623
    %v625 = vmul.f32 %v538, 1.442695
    %v626 = vpow.pop %v625
    %v627 = vmul.f32 %v539, 1.442695
    %v628 = vpow.pop %v627
    %v629 = vmul.f32 %v540, 1.442695
    %v630 = vpow.pop %v629
    %v631 = vmul.f32 %v541, 1.442695
    %v632 = vpow.pop %v631
    %v633 = vmul.f32 %v542, 1.442695
    %v634 = vpow.pop %v633
    %v635 = vmul.f32 %v543, 1.442695
    %v636 = vpow.pop %v635
    %v637 = vmul.f32 %v544, 1.442695
    %v638 = vpow.pop %v637
    %v639 = vmul.f32 %v545, 1.442695
    %v640 = vpow.pop %v639
    %v641 = vmul.f32 %v546, 1.442695
    %v642 = vpow.pop %v641
    %v643 = vmul.f32 %v547, 1.442695
    %v644 = vpow.pop %v643
    %v645 = vmul.f32 %v548, 1.442695
    %v646 = vpow.pop %v645
    %v647 = vmul.f32 %v549, 1.442695
    %v648 = vpow.pop %v647
    %v649 = vmul.f32 %v550, 1.442695
    %v650 = vpow.pop %v649
    %v651 = vmul.f32 %v551, 1.442695
    %v652 = vpow.pop %v651
    %v653 = vmul.f32 %v552, 1.442695
    %v654 = vpow.pop %v653
    %v655 = vmul.f32 %v553, 1.442695
    %v656 = vpow.pop %v655
    %v657 = vmul.f32 %v554, 1.442695
    %v658 = vpow.pop %v657
    %v659 = vmul.f32 %v555, 1.442695
    %v660 = vpow.pop %v659
    %v661 = vmul.f32 %v556, 1.442695
    %v662 = vpow.pop %v661
    %v663 = vmul.f32 %v557, 1.442695
    %v664 = vpow.pop %v663
    %v665 = vmul.f32 %v558, 1.442695
    %v666 = vpow.pop %v665
    %v667 = vmul.f32 %v559, 1.442695
    %v668 = vpow.pop %v667
    %v669 = vmul.f32 %v560, 1.442695
    %v670 = vpow.pop %v669
    %v671 = vmul.f32 %v561, 1.442695
    %v672 = vpow.pop %v671
    %v673 = vmul.f32 %v562, 1.442695
    %v674 = vpow.pop %v673
    %v675 = vmul.f32 %v563, 1.442695
    %v676 = vpow.pop %v675
    %v677 = vmul.f32 %v564, 1.442695
    %v678 = vpow.pop %v677
    %v679 = vmul.f32 %v565, 1.442695
    %v680 = vpow.pop %v679
    %v681 = vmul.f32 %v566, 1.442695
    %v682 = vpow.pop %v681
    %v683 = vmul.f32 %v567, 1.442695
    %v684 = vpow.pop %v683
    %v685 = vmul.f32 %v568, 1.442695
    %v686 = vpow.pop %v685
    %v687 = vmul.f32 %v569, 1.442695
    %v688 = vpow.pop %v687
    %v689 = vmul.f32 %v570, 1.442695
    %v690 = vpow.pop %v689
    %v691 = vmul.f32 %v571, 1.442695
    %v692 = vpow.pop %v691
    %v693 = vmul.f32 %v572, 1.442695
    %v694 = vpow.pop %v693
    %v695 = vmul.f32 %v573, 1.442695
    %v696 = vpow.pop %v695
    %v697 = vmul.f32 %v574, 1.442695
    %v698 = vpow.pop %v697
    %v699 = vmul.f32 %v575, 1.442695
    %v700 = vpow.pop %v699
    %v701 = vmul.f32 %v576, 1.442695
    %v702 = vpow.pop %v701
    %v703 = vmul.f32 %v577, 1.442695
    %v704 = vpow.pop %v703
    %v705 = vmul.f32 %v578, 1.442695
    %v706 = vpow.pop %v705
    %707 = vst [vmem:[#allocation7] sm:$0xff] %v580
    %708 = vst [vmem:[#allocation7 + $0x8] sm:$0xff] %v582
    %709 = vst [vmem:[#allocation7 + $0x10] sm:$0xff] %v584
    %710 = vst [vmem:[#allocation7 + $0x18] sm:$0xff] %v586
    %711 = vst [vmem:[#allocation7 + $0x20] sm:$0xff] %v588
    %712 = vst [vmem:[#allocation7 + $0x28] sm:$0xff] %v590
    %713 = vst [vmem:[#allocation7 + $0x30] sm:$0xff] %v592
    %714 = vst [vmem:[#allocation7 + $0x38] sm:$0xff] %v594
    %715 = vst [vmem:[#allocation7 + $0x40] sm:$0xff] %v596
    %716 = vst [vmem:[#allocation7 + $0x48] sm:$0xff] %v598
    %717 = vst [vmem:[#allocation7 + $0x50] sm:$0xff] %v600
    %718 = vst [vmem:[#allocation7 + $0x58] sm:$0xff] %v602
    %719 = vst [vmem:[#allocation7 + $0x60] sm:$0xff] %v604
    %720 = vst [vmem:[#allocation7 + $0x68] sm:$0xff] %v606
    %721 = vst [vmem:[#allocation7 + $0x70] sm:$0xff] %v608
    %722 = vst [vmem:[#allocation7 + $0x78] sm:$0xff] %v610
    %723 = vst [vmem:[#allocation7 + $0x80] sm:$0xff] %v612
    %724 = vst [vmem:[#allocation7 + $0x88] sm:$0xff] %v614
    %725 = vst [vmem:[#allocation7 + $0x90] sm:$0xff] %v616
    %726 = vst [vmem:[#allocation7 + $0x98] sm:$0xff] %v618
    %727 = vst [vmem:[#allocation7 + $0xa0] sm:$0xff] %v620
    %728 = vst [vmem:[#allocation7 + $0xa8] sm:$0xff] %v622
    %729 = vst [vmem:[#allocation7 + $0xb0] sm:$0xff] %v624
    %730 = vst [vmem:[#allocation7 + $0xb8] sm:$0xff] %v626
    %731 = vst [vmem:[#allocation7 + $0xc0] sm:$0xff] %v628
    %732 = vst [vmem:[#allocation7 + $0xc8] sm:$0xff] %v630
    %733 = vst [vmem:[#allocation7 + $0xd0] sm:$0xff] %v632
    %734 = vst [vmem:[#allocation7 + $0xd8] sm:$0xff] %v634
    %735 = vst [vmem:[#allocation7 + $0xe0] sm:$0xff] %v636
    %736 = vst [vmem:[#allocation7 + $0xe8] sm:$0xff] %v638
    %737 = vst [vmem:[#allocation7 + $0xf0] sm:$0xff] %v640
    %738 = vst [vmem:[#allocation7 + $0xf8] sm:$0xff] %v642
    %739 = vst [vmem:[#allocation7 + $0x100] sm:$0xff] %v644
    %740 = vst [vmem:[#allocation7 + $0x108] sm:$0xff] %v646
    %741 = vst [vmem:[#allocation7 + $0x110] sm:$0xff] %v648
    %742 = vst [vmem:[#allocation7 + $0x118] sm:$0xff] %v650
    %743 = vst [vmem:[#allocation7 + $0x120] sm:$0xff] %v652
    %744 = vst [vmem:[#allocation7 + $0x128] sm:$0xff] %v654
    %745 = vst [vmem:[#allocation7 + $0x130] sm:$0xff] %v656
    %746 = vst [vmem:[#allocation7 + $0x138] sm:$0xff] %v658
    %747 = vst [vmem:[#allocation7 + $0x140] sm:$0xff] %v660
    %748 = vst [vmem:[#allocation7 + $0x148] sm:$0xff] %v662
    %749 = vst [vmem:[#allocation7 + $0x150] sm:$0xff] %v664
    %750 = vst [vmem:[#allocation7 + $0x158] sm:$0xff] %v666
    %751 = vst [vmem:[#allocation7 + $0x160] sm:$0xff] %v668
    %752 = vst [vmem:[#allocation7 + $0x168] sm:$0xff] %v670
    %753 = vst [vmem:[#allocation7 + $0x170] sm:$0xff] %v672
    %754 = vst [vmem:[#allocation7 + $0x178] sm:$0xff] %v674
    %755 = vst [vmem:[#allocation7 + $0x180] sm:$0xff] %v676
    %756 = vst [vmem:[#allocation7 + $0x188] sm:$0xff] %v678
    %757 = vst [vmem:[#allocation7 + $0x190] sm:$0xff] %v680
    %758 = vst [vmem:[#allocation7 + $0x198] sm:$0xff] %v682
    %759 = vst [vmem:[#allocation7 + $0x1a0] sm:$0xff] %v684
    %760 = vst [vmem:[#allocation7 + $0x1a8] sm:$0xff] %v686
    %761 = vst [vmem:[#allocation7 + $0x1b0] sm:$0xff] %v688
    %762 = vst [vmem:[#allocation7 + $0x1b8] sm:$0xff] %v690
    %763 = vst [vmem:[#allocation7 + $0x1c0] sm:$0xff] %v692
    %764 = vst [vmem:[#allocation7 + $0x1c8] sm:$0xff] %v694
    %765 = vst [vmem:[#allocation7 + $0x1d0] sm:$0xff] %v696
    %766 = vst [vmem:[#allocation7 + $0x1d8] sm:$0xff] %v698
    %767 = vst [vmem:[#allocation7 + $0x1e0] sm:$0xff] %v700
    %768 = vst [vmem:[#allocation7 + $0x1e8] sm:$0xff] %v702
    %769 = vst [vmem:[#allocation7 + $0x1f0] sm:$0xff] %v704
    %770 = vst [vmem:[#allocation7 + $0x1f8] sm:$0xff] %v706
    // Predicated region
    $region22: #{tpu_custom_call.1} parent=1 // pred_check
      _
    $region23: #{tpu_custom_call.1} parent=1 // pred_check_branch
      %772 = sbr.rel (0) target = $region25
    $region24: #{tpu_custom_call.1} parent=1 // pred_region
      %s774 = ssub.s32 8192, 8192
      %775 = vsyncadd [#allocation4], %s774
      %s776 = sshll.u32 [#allocation7], 4
      %s777 = int_to_ptr.vmem [resolvable:$true] %s776
      %782 = dma.vmem_to_hbm [thread:$0]  %s777, 8192, %s3, [#allocation4], 128, 128, 8
    $region25: #{tpu_custom_call.1} parent=1 // pred_fallthru
      _
    // Predicated region
    $region26: #{tpu_custom_call.1} parent=1 // pred_check
      _
    $region27: #{tpu_custom_call.1} parent=1 // pred_check_branch
      %784 = sbr.rel (0) target = $region29
    $region28: #{tpu_custom_call.1} parent=1 // pred_region
      %785 = dma.done [#allocation4], 8192
    $region29: #{tpu_custom_call.1} parent=1 // pred_fallthru
      _
    %786 = vsyncpa [#allocation3], 1
    %787 = vsyncpa [#allocation6], 1
    %788 = vsyncpa [#allocation4], 1

</llo_original>
